<compile_context>
chip_gen: v7x
topology: tpu7x:2x2x1
jax: 0.10.0
libtpu: 0.0.40
codegen_flags: <defaults>
</compile_context>

<pallas_src>
import jax
import jax.numpy as jnp
from jax.experimental import pallas as pl
from jax.experimental.pallas import tpu as pltpu


def _round_up(x, m):
    return ((x + m - 1) // m) * m


def resmlp_kernel(x_ref, w1_ref, b1_ref, w2_ref, b2_ref, o_ref):
    # fc[0]: h = relu(x @ W1 + b1) -- bf16 MXU matmul, f32 accumulation.
    h = jnp.dot(x_ref[...].astype(jnp.bfloat16), w1_ref[...],
                preferred_element_type=jnp.float32)
    h = jnp.maximum(h + b1_ref[...], 0.0)            # bias + ReLU in f32 (VPU)
    # fc[2]: y = h @ W2 + b2
    y = jnp.dot(h.astype(jnp.bfloat16), w2_ref[...],
                preferred_element_type=jnp.float32)
    # bias + residual; re-read x_ref here so x isn't kept live across matmuls.
    o_ref[...] = (y + b2_ref[...] + x_ref[...]).astype(o_ref.dtype)


def _choose_tb(B, C, avail_bytes, block_b):
    """Batch-tile rows: large enough to amortize per-step overhead, small
    enough to fit VMEM, and >=2 grid steps whenever the batch is splittable."""
    per_row = 4 * C * 4                      # x + out tiles, 2-deep each, f32
    tb = max(8, avail_bytes // per_row)
    tb = min(tb, block_b, _round_up(B, 8))
    if B > 8:                                # keep >=2 grid steps (v7x: 2 TCs)
        tb = min(tb, _round_up(pl.cdiv(B, 2), 8))
    tb = max(8, (tb // 8) * 8)               # sublane multiple
    if B < tb:                               # block dim must be 8-divisible or == B
        tb = B
    return tb


def resmlp(x, w1, b1, w2, b2, *, block_b=1024):
    """ResMLP forward. x: (B, C) f32; w1, w2: (C, C) PyTorch (out, in); b: (C,)."""
    B, C = x.shape

    # One-time weight prep (tiny, off the streamed-activation hot path):
    # transpose to (in, out) for canonical contraction, cast to bf16 for
    # native MXU throughput + half the resident VMEM. Biases stay f32.
    w1t = jnp.asarray(w1, jnp.float32).T.astype(jnp.bfloat16)
    w2t = jnp.asarray(w2, jnp.float32).T.astype(jnp.bfloat16)
    b1r = jnp.asarray(b1, jnp.float32).reshape(1, C)
    b2r = jnp.asarray(b2, jnp.float32).reshape(1, C)

    # Generation-aware VMEM budget (v5e/v6e: 128 MiB; v7x: 64 MiB per TC).
    try:
        vmem_cap = int(pltpu.get_tpu_info().vmem_capacity_bytes)
    except Exception:
        vmem_cap = 64 << 20
    vmem_budget = int(vmem_cap * 0.85)

    resident = 2 * C * C * 2 + 2 * C * 4     # single-buffered bf16 W + f32 b
    tb = _choose_tb(B, C, vmem_budget - resident - (2 << 20), block_b)
    grid = (pl.cdiv(B, tb),)

    # 2x on the resident term also covers the double-buffered fallback path.
    vmem_need = 4 * tb * C * 4 + 2 * resident + (2 << 20)
    vmem_limit = int(min(max(vmem_need, 8 << 20), vmem_budget))

    cost = pl.CostEstimate(
        flops=4 * B * C * C,                                    # two matmuls
        bytes_accessed=2 * B * C * 4 + 2 * C * C * 2 + 2 * C * 4,
        transcendentals=0)

    def make_call(single_buffer_weights):
        x_spec = pl.BlockSpec((tb, C), lambda i: (i, 0))        # streamed
        o_spec = pl.BlockSpec((tb, C), lambda i: (i, 0))
        if single_buffer_weights:
            w_spec = pl.BlockSpec((C, C), lambda i: (0, 0),
                                  pipeline_mode=pl.Buffered(1))
            b_spec = pl.BlockSpec((1, C), lambda i: (0, 0),
                                  pipeline_mode=pl.Buffered(1))
        else:
            w_spec = pl.BlockSpec((C, C), lambda i: (0, 0))
            b_spec = pl.BlockSpec((1, C), lambda i: (0, 0))
        return pl.pallas_call(
            resmlp_kernel,
            out_shape=jax.ShapeDtypeStruct((B, C), x.dtype),
            grid=grid,
            in_specs=[x_spec, w_spec, b_spec, w_spec, b_spec],
            out_specs=o_spec,
            compiler_params=pltpu.CompilerParams(
                dimension_semantics=("parallel",),
                vmem_limit_bytes=vmem_limit),
            cost_estimate=cost,
        )

    try:
        return make_call(True)(x, w1t, b1r, w2t, b2r)
    except Exception:
        # TODO(synk): drop this fallback once pl.Buffered(1) on constant-index
        # resident weights is confirmed on the deployed jax version.
        return make_call(False)(x, w1t, b1r, w2t, b2r)


def init_params(key, in_channels):
    # Deterministic init mimicking torch.nn.Linear default (U(+-1/sqrt(fan_in))).
    k1, k2, k3, k4 = jax.random.split(key, 4)
    bound = 1.0 / jnp.sqrt(jnp.float32(in_channels))
    w1 = jax.random.uniform(k1, (in_channels, in_channels), jnp.float32, -bound, bound)
    b1 = jax.random.uniform(k2, (in_channels,), jnp.float32, -bound, bound)
    w2 = jax.random.uniform(k3, (in_channels, in_channels), jnp.float32, -bound, bound)
    b2 = jax.random.uniform(k4, (in_channels,), jnp.float32, -bound, bound)
    return w1, b1, w2, b2


def _reference(x, w1, b1, w2, b2):
    return jnp.maximum(x @ w1.T + b1, 0.0) @ w2.T + b2 + x


if __name__ == "__main__":
    key = jax.random.PRNGKey(0)
    kx, kp, kx2, kp2 = jax.random.split(key, 4)

    # Case 1: small, lane-unaligned channel dim (C=32 stays unpadded).
    batch, in_channels = 8, 32
    x = jax.random.normal(kx, (batch, in_channels), jnp.float32)
    params = init_params(kp, in_channels)
    ref = _reference(x, *params)
    out = jax.block_until_ready(resmlp(x, *params))
    assert out.shape == (batch, in_channels)
    # bf16 matmul operands (f32 accumulation) -> relaxed tolerance vs f32 ref.
    assert jnp.allclose(out, ref, atol=3e-2, rtol=3e-2), \
        f"max abs err {jnp.max(jnp.abs(out - ref))}"

    # Case 2: lane-aligned channels, multi-step grid with a partial last tile.
    batch2, channels2 = 24, 128
    x2 = jax.random.normal(kx2, (batch2, channels2), jnp.float32)
    p2 = init_params(kp2, channels2)
    ref2 = _reference(x2, *p2)
    out2 = jax.block_until_ready(resmlp(x2, *p2, block_b=16))
    assert out2.shape == (batch2, channels2)
    assert jnp.allclose(out2, ref2, atol=3e-2, rtol=3e-2), \
        f"max abs err {jnp.max(jnp.abs(out2 - ref2))}"

    print("KERNEL_OK")
</pallas_src>

<mosaic_0001>
module attributes {stable_mosaic.version = 11 : i64} {
  func.func @resmlp_kernel(%arg0: i32, %arg1: memref<8x32xf32, #tpu.memory_space<vmem>>, %arg2: memref<32x32xbf16, #tpu.memory_space<vmem>>, %arg3: memref<1x32xf32, #tpu.memory_space<vmem>>, %arg4: memref<32x32xbf16, #tpu.memory_space<vmem>>, %arg5: memref<1x32xf32, #tpu.memory_space<vmem>>, %arg6: memref<8x32xf32, #tpu.memory_space<vmem>>) attributes {dimension_semantics = [#tpu.dimension_semantics<parallel>], iteration_bounds = array<i64: 1>, scalar_prefetch = 0 : i64, scratch_operands = 0 : i64, tpu.core_type = #tpu.core_type<tc>, window_params = [{transform_indices = @transform_0, window_bounds = array<i64: 8, 32>}, {pipeline_mode = #tpu.pipeline_mode<synchronous>, transform_indices = @transform_1, window_bounds = array<i64: 32, 32>}, {pipeline_mode = #tpu.pipeline_mode<synchronous>, transform_indices = @transform_2, window_bounds = array<i64: 1, 32>}, {pipeline_mode = #tpu.pipeline_mode<synchronous>, transform_indices = @transform_3, window_bounds = array<i64: 32, 32>}, {pipeline_mode = #tpu.pipeline_mode<synchronous>, transform_indices = @transform_4, window_bounds = array<i64: 1, 32>}, {transform_indices = @transform_5, window_bounds = array<i64: 8, 32>}]} {
    %c0 = arith.constant 0 : index
    %c0_0 = arith.constant 0 : index
    %0 = vector.load %arg1[%c0, %c0_0] : memref<8x32xf32, #tpu.memory_space<vmem>>, vector<8x32xf32>
    %1 = arith.truncf %0 : vector<8x32xf32> to vector<8x32xbf16>
    %c0_1 = arith.constant 0 : index
    %c0_2 = arith.constant 0 : index
    %2 = vector.load %arg2[%c0_1, %c0_2] : memref<32x32xbf16, #tpu.memory_space<vmem>>, vector<32x32xbf16>
    %cst = arith.constant dense<0.000000e+00> : vector<8x32xf32>
    %3 = tpu.matmul %1, %2, %cst {dimension_numbers = #tpu.dot_dimension_numbers<[1], [0], [0], [1], [0, 0, 1, 1], [], []>} : vector<8x32xbf16>, vector<32x32xbf16>, vector<8x32xf32> -> vector<8x32xf32>
    %c0_3 = arith.constant 0 : index
    %c0_4 = arith.constant 0 : index
    %4 = vector.load %arg3[%c0_3, %c0_4] : memref<1x32xf32, #tpu.memory_space<vmem>>, vector<1x32xf32>
    %5 = vector.broadcast %4 : vector<1x32xf32> to vector<8x32xf32>
    %6 = arith.addf %3, %5 : vector<8x32xf32>
    %cst_5 = arith.constant 0.000000e+00 : f32
    %7 = vector.broadcast %cst_5 : f32 to vector<8x32xf32>
    %8 = arith.maximumf %6, %7 : vector<8x32xf32>
    %9 = arith.truncf %8 : vector<8x32xf32> to vector<8x32xbf16>
    %c0_6 = arith.constant 0 : index
    %c0_7 = arith.constant 0 : index
    %10 = vector.load %arg4[%c0_6, %c0_7] : memref<32x32xbf16, #tpu.memory_space<vmem>>, vector<32x32xbf16>
    %cst_8 = arith.constant dense<0.000000e+00> : vector<8x32xf32>
    %11 = tpu.matmul %9, %10, %cst_8 {dimension_numbers = #tpu.dot_dimension_numbers<[1], [0], [0], [1], [0, 0, 1, 1], [], []>} : vector<8x32xbf16>, vector<32x32xbf16>, vector<8x32xf32> -> vector<8x32xf32>
    %c0_9 = arith.constant 0 : index
    %c0_10 = arith.constant 0 : index
    %12 = vector.load %arg5[%c0_9, %c0_10] : memref<1x32xf32, #tpu.memory_space<vmem>>, vector<1x32xf32>
    %13 = vector.broadcast %12 : vector<1x32xf32> to vector<8x32xf32>
    %14 = arith.addf %11, %13 : vector<8x32xf32>
    %c0_11 = arith.constant 0 : index
    %c0_12 = arith.constant 0 : index
    %15 = vector.load %arg1[%c0_11, %c0_12] : memref<8x32xf32, #tpu.memory_space<vmem>>, vector<8x32xf32>
    %16 = arith.addf %14, %15 : vector<8x32xf32>
    %c0_13 = arith.constant 0 : index
    %c0_14 = arith.constant 0 : index
    %17 = vector.load %arg6[%c0_13, %c0_14] : memref<8x32xf32, #tpu.memory_space<vmem>>, vector<8x32xf32>
    tpu.vector_store %arg6[%c0_13, %c0_14], %16 {strides = array<i32>} : memref<8x32xf32, #tpu.memory_space<vmem>>, vector<8x32xf32>,
    return
  }
  func.func @transform_0(%arg0: i32) -> (i32, i32) {
    %c0_i32 = arith.constant 0 : i32
    %c0_i32_0 = arith.constant 0 : i32
    return %arg0, %c0_i32 : i32, i32
  }
  func.func @transform_1(%arg0: i32) -> (i32, i32) {
    %c0_i32 = arith.constant 0 : i32
    %c0_i32_0 = arith.constant 0 : i32
    %c0_i32_1 = arith.constant 0 : i32
    return %c0_i32, %c0_i32_0 : i32, i32
  }
  func.func @transform_2(%arg0: i32) -> (i32, i32) {
    %c0_i32 = arith.constant 0 : i32
    %c0_i32_0 = arith.constant 0 : i32
    %c0_i32_1 = arith.constant 0 : i32
    return %c0_i32, %c0_i32_0 : i32, i32
  }
  func.func @transform_3(%arg0: i32) -> (i32, i32) {
    %c0_i32 = arith.constant 0 : i32
    %c0_i32_0 = arith.constant 0 : i32
    %c0_i32_1 = arith.constant 0 : i32
    return %c0_i32, %c0_i32_0 : i32, i32
  }
  func.func @transform_4(%arg0: i32) -> (i32, i32) {
    %c0_i32 = arith.constant 0 : i32
    %c0_i32_0 = arith.constant 0 : i32
    %c0_i32_1 = arith.constant 0 : i32
    return %c0_i32, %c0_i32_0 : i32, i32
  }
  func.func @transform_5(%arg0: i32) -> (i32, i32) {
    %c0_i32 = arith.constant 0 : i32
    %c0_i32_0 = arith.constant 0 : i32
    return %arg0, %c0_i32 : i32, i32
  }
}

module attributes {stable_mosaic.version = 11 : i64} {
  func.func @resmlp_kernel(%arg0: i32, %arg1: memref<8x32xf32, #tpu.memory_space<vmem>>, %arg2: memref<32x32xbf16, #tpu.memory_space<vmem>>, %arg3: memref<1x32xf32, #tpu.memory_space<vmem>>, %arg4: memref<32x32xbf16, #tpu.memory_space<vmem>>, %arg5: memref<1x32xf32, #tpu.memory_space<vmem>>, %arg6: memref<8x32xf32, #tpu.memory_space<vmem>>) attributes {dimension_semantics = [#tpu.dimension_semantics<parallel>], iteration_bounds = array<i64: 1>, scalar_prefetch = 0 : i64, scratch_operands = 0 : i64, tpu.core_type = #tpu.core_type<tc>, window_params = [{transform_indices = @transform_0, window_bounds = array<i64: 8, 32>}, {pipeline_mode = #tpu.pipeline_mode<synchronous>, transform_indices = @transform_1, window_bounds = array<i64: 32, 32>}, {pipeline_mode = #tpu.pipeline_mode<synchronous>, transform_indices = @transform_2, window_bounds = array<i64: 1, 32>}, {pipeline_mode = #tpu.pipeline_mode<synchronous>, transform_indices = @transform_3, window_bounds = array<i64: 32, 32>}, {pipeline_mode = #tpu.pipeline_mode<synchronous>, transform_indices = @transform_4, window_bounds = array<i64: 1, 32>}, {transform_indices = @transform_5, window_bounds = array<i64: 8, 32>}]} {
    %c0 = arith.constant 0 : index
    %c0_0 = arith.constant 0 : index
    %0 = vector.load %arg1[%c0, %c0_0] : memref<8x32xf32, #tpu.memory_space<vmem>>, vector<8x32xf32>
    %1 = arith.truncf %0 : vector<8x32xf32> to vector<8x32xbf16>
    %c0_1 = arith.constant 0 : index
    %c0_2 = arith.constant 0 : index
    %2 = vector.load %arg2[%c0_1, %c0_2] : memref<32x32xbf16, #tpu.memory_space<vmem>>, vector<32x32xbf16>
    %cst = arith.constant dense<0.000000e+00> : vector<8x32xf32>
    %3 = tpu.matmul %1, %2, %cst {dimension_numbers = #tpu.dot_dimension_numbers<[1], [0], [0], [1], [0, 0, 1, 1], [], []>} : vector<8x32xbf16>, vector<32x32xbf16>, vector<8x32xf32> -> vector<8x32xf32>
    %c0_3 = arith.constant 0 : index
    %c0_4 = arith.constant 0 : index
    %4 = vector.load %arg3[%c0_3, %c0_4] : memref<1x32xf32, #tpu.memory_space<vmem>>, vector<1x32xf32>
    %5 = vector.broadcast %4 : vector<1x32xf32> to vector<8x32xf32>
    %6 = arith.addf %3, %5 : vector<8x32xf32>
    %cst_5 = arith.constant 0.000000e+00 : f32
    %7 = vector.broadcast %cst_5 : f32 to vector<8x32xf32>
    %8 = arith.maximumf %6, %7 : vector<8x32xf32>
    %9 = arith.truncf %8 : vector<8x32xf32> to vector<8x32xbf16>
    %c0_6 = arith.constant 0 : index
    %c0_7 = arith.constant 0 : index
    %10 = vector.load %arg4[%c0_6, %c0_7] : memref<32x32xbf16, #tpu.memory_space<vmem>>, vector<32x32xbf16>
    %cst_8 = arith.constant dense<0.000000e+00> : vector<8x32xf32>
    %11 = tpu.matmul %9, %10, %cst_8 {dimension_numbers = #tpu.dot_dimension_numbers<[1], [0], [0], [1], [0, 0, 1, 1], [], []>} : vector<8x32xbf16>, vector<32x32xbf16>, vector<8x32xf32> -> vector<8x32xf32>
    %c0_9 = arith.constant 0 : index
    %c0_10 = arith.constant 0 : index
    %12 = vector.load %arg5[%c0_9, %c0_10] : memref<1x32xf32, #tpu.memory_space<vmem>>, vector<1x32xf32>
    %13 = vector.broadcast %12 : vector<1x32xf32> to vector<8x32xf32>
    %14 = arith.addf %11, %13 : vector<8x32xf32>
    %c0_11 = arith.constant 0 : index
    %c0_12 = arith.constant 0 : index
    %15 = vector.load %arg1[%c0_11, %c0_12] : memref<8x32xf32, #tpu.memory_space<vmem>>, vector<8x32xf32>
    %16 = arith.addf %14, %15 : vector<8x32xf32>
    %c0_13 = arith.constant 0 : index
    %c0_14 = arith.constant 0 : index
    %17 = vector.load %arg6[%c0_13, %c0_14] : memref<8x32xf32, #tpu.memory_space<vmem>>, vector<8x32xf32>
    tpu.vector_store %arg6[%c0_13, %c0_14], %16 {strides = array<i32>} : memref<8x32xf32, #tpu.memory_space<vmem>>, vector<8x32xf32>,
    return
  }
  func.func @transform_0(%arg0: i32) -> (i32, i32) {
    %c0_i32 = arith.constant 0 : i32
    %c0_i32_0 = arith.constant 0 : i32
    return %arg0, %c0_i32 : i32, i32
  }
  func.func @transform_1(%arg0: i32) -> (i32, i32) {
    %c0_i32 = arith.constant 0 : i32
    %c0_i32_0 = arith.constant 0 : i32
    %c0_i32_1 = arith.constant 0 : i32
    return %c0_i32, %c0_i32_0 : i32, i32
  }
  func.func @transform_2(%arg0: i32) -> (i32, i32) {
    %c0_i32 = arith.constant 0 : i32
    %c0_i32_0 = arith.constant 0 : i32
    %c0_i32_1 = arith.constant 0 : i32
    return %c0_i32, %c0_i32_0 : i32, i32
  }
  func.func @transform_3(%arg0: i32) -> (i32, i32) {
    %c0_i32 = arith.constant 0 : i32
    %c0_i32_0 = arith.constant 0 : i32
    %c0_i32_1 = arith.constant 0 : i32
    return %c0_i32, %c0_i32_0 : i32, i32
  }
  func.func @transform_4(%arg0: i32) -> (i32, i32) {
    %c0_i32 = arith.constant 0 : i32
    %c0_i32_0 = arith.constant 0 : i32
    %c0_i32_1 = arith.constant 0 : i32
    return %c0_i32, %c0_i32_0 : i32, i32
  }
  func.func @transform_5(%arg0: i32) -> (i32, i32) {
    %c0_i32 = arith.constant 0 : i32
    %c0_i32_0 = arith.constant 0 : i32
    return %arg0, %c0_i32 : i32, i32
  }
}

</mosaic_0001>

<llo_original>
// kernel: tpu_custom_call.1
$region0: #{tpu_custom_call.1}
  #allocation0 [shape = 'u32[]', space=smem, size = 0x4, offset = 0x4, fixed_abs, tag = 'smem constant byte address 0x4 - core index']
  #allocation1 [shape = 'u32[144,128]{1,0:T(1,128)}', space=vmem, size = 0x12000, scoped, tag = 'internal scratch']
  %s0 = inlined_call_operand.hbm [shape: f32[8,32], index: 0, kind: input, shape index: {}]
  %s1 = inlined_call_operand.hbm [shape: bf16[32,32], index: 1, kind: input, shape index: {}]
  %s2 = inlined_call_operand.vmem [shape: f32[1,32], index: 2, kind: input, shape index: {}]
  %s3 = inlined_call_operand.hbm [shape: bf16[32,32], index: 3, kind: input, shape index: {}]
  %s4 = inlined_call_operand.vmem [shape: f32[1,32], index: 4, kind: input, shape index: {}]
  %s5 = inlined_call_operand.hbm [shape: f32[8,32], index: 5, kind: output, shape index: {}]
  %s6 = sld [smem:[#allocation0]]
  $region42: #{tpu_custom_call.1} parent=0
    _
  %s8 = ssub.s32 1, %s6
  %s9 = scalar_select 0, %s8, %s6
  $region1: #{tpu_custom_call.1} parent=0
    #allocation2 [shape = 'u8[4096]{0}', space=vmem, size = 0x1000, scoped, tag = 'input window, operand 0, single buffered']
    #allocation3 [shape = 's32[1]{0}', space=sflag, size = 0x4, scoped, tag = 'scoped memory for tpu_custom_call.1']
    #allocation4 [shape = 's32[1]{0}', space=sflag, size = 0x4, scoped, tag = 'scoped memory for tpu_custom_call.1']
    #allocation5 [shape = 'u8[8192]{0}', space=vmem, size = 0x2000, scoped, tag = 'input window, operand 1, single buffered']
    #allocation6 [shape = 's32[1]{0}', space=sflag, size = 0x4, scoped, tag = 'scoped memory for tpu_custom_call.1']
    #allocation7 [shape = 'u8[8192]{0}', space=vmem, size = 0x2000, scoped, tag = 'input window, operand 3, single buffered']
    #allocation8 [shape = 'u8[4096]{0}', space=vmem, size = 0x1000, scoped, tag = 'output window, operand 0, single buffered']
    %10 = vsyncpa [#allocation3], 0
    %11 = vsyncpa [#allocation6], 0
    %12 = vsyncpa [#allocation4], 0
    // Predicated region
    $region2: #{tpu_custom_call.1} parent=1 // pred_check
      _
    $region3: #{tpu_custom_call.1} parent=1 // pred_check_branch
      %14 = sbr.rel (0) target = $region5
    $region4: #{tpu_custom_call.1} parent=1 // pred_region
      %s16 = ssub.s32 128, 128
      %17 = vsyncadd [#allocation3], %s16
      %s19 = sshll.u32 [#allocation2], 4
      %s20 = int_to_ptr.vmem [resolvable:$true] %s19
      %22 = dma.hbm_to_vmem [thread:$0]  %s0, 128, %s20, [#allocation3]
    $region5: #{tpu_custom_call.1} parent=1 // pred_fallthru
      _
    // Predicated region
    $region6: #{tpu_custom_call.1} parent=1 // pred_check
      _
    $region7: #{tpu_custom_call.1} parent=1 // pred_check_branch
      %24 = sbr.rel (0) target = $region9
    $region8: #{tpu_custom_call.1} parent=1 // pred_region
      %s26 = ssub.s32 256, 256
      %27 = vsyncadd [#allocation6], %s26
      %s28 = sshll.u32 [#allocation5], 4
      %s29 = int_to_ptr.vmem [resolvable:$true] %s28
      %34 = dma.hbm_to_vmem [thread:$0]  %s1, 256, %s29, [#allocation6], 64, 64, 4
    $region9: #{tpu_custom_call.1} parent=1 // pred_fallthru
      _
    // Predicated region
    $region10: #{tpu_custom_call.1} parent=1 // pred_check
      _
    $region11: #{tpu_custom_call.1} parent=1 // pred_check_branch
      %36 = sbr.rel (0) target = $region13
    $region12: #{tpu_custom_call.1} parent=1 // pred_region
      _
    $region13: #{tpu_custom_call.1} parent=1 // pred_fallthru
      _
    // Predicated region
    $region14: #{tpu_custom_call.1} parent=1 // pred_check
      _
    $region15: #{tpu_custom_call.1} parent=1 // pred_check_branch
      %38 = sbr.rel (0) target = $region17
    $region16: #{tpu_custom_call.1} parent=1 // pred_region
      %s40 = ssub.s32 256, 256
      %41 = vsyncadd [#allocation6], %s40
      %s42 = sshll.u32 [#allocation7], 4
      %s43 = int_to_ptr.vmem [resolvable:$true] %s42
      %48 = dma.hbm_to_vmem [thread:$0]  %s3, 256, %s43, [#allocation6], 64, 64, 4
    $region17: #{tpu_custom_call.1} parent=1 // pred_fallthru
      _
    // Predicated region
    $region18: #{tpu_custom_call.1} parent=1 // pred_check
      _
    $region19: #{tpu_custom_call.1} parent=1 // pred_check_branch
      %50 = sbr.rel (0) target = $region21
    $region20: #{tpu_custom_call.1} parent=1 // pred_region
      _
    $region21: #{tpu_custom_call.1} parent=1 // pred_fallthru
      _
    // Predicated region
    $region22: #{tpu_custom_call.1} parent=1 // pred_check
      _
    $region23: #{tpu_custom_call.1} parent=1 // pred_check_branch
      %52 = sbr.rel (0) target = $region25
    $region24: #{tpu_custom_call.1} parent=1 // pred_region
      %53 = dma.done [#allocation3], 128
    $region25: #{tpu_custom_call.1} parent=1 // pred_fallthru
      _
    // Predicated region
    $region26: #{tpu_custom_call.1} parent=1 // pred_check
      _
    $region27: #{tpu_custom_call.1} parent=1 // pred_check_branch
      %55 = sbr.rel (0) target = $region29
    $region28: #{tpu_custom_call.1} parent=1 // pred_region
      %56 = dma.done [#allocation6], 256
    $region29: #{tpu_custom_call.1} parent=1 // pred_fallthru
      _
    // Predicated region
    $region30: #{tpu_custom_call.1} parent=1 // pred_check
      _
    $region31: #{tpu_custom_call.1} parent=1 // pred_check_branch
      %58 = sbr.rel (0) target = $region33
    $region32: #{tpu_custom_call.1} parent=1 // pred_region
      %59 = dma.done [#allocation6], 256
    $region33: #{tpu_custom_call.1} parent=1 // pred_fallthru
      _
    %v61 = vld [vmem:[#allocation2] sm:$0xff]
    %v62 = vpack.c.bf16 %v61, %v61
    %v63 = vld [vmem:[#allocation5] sm:$0xf]
    %v64 = vld [vmem:[#allocation5 + $0x4] sm:$0xf]
    %v65 = vld [vmem:[#allocation5 + $0x8] sm:$0xf]
    %v66 = vld [vmem:[#allocation5 + $0xc] sm:$0xf]
    %v67 = vld [vmem:[%s2] sm:$0x1]
    %v69 = vlaneseq
    %v70 = vshrl.u32 %v69, 7
    %v71 = vsub.s32 0, %v70
    %v72 = vrot.slane %v67, %v71
    %v78 = vunpack.c.l.b16 %v63
    %v79 = vunpack.c.l.b16 %v64
    %v80 = vunpack.c.l.b16 %v65
    %v81 = vunpack.c.l.b16 %v66
    %v82 = vpack.c.b16 %v79, %v78
    %v83 = vpack.c.b16 %v81, %v80
    %vm86 = vcmask 261120
    %v88 = vsel %vm86, %v62, 0
    %90 = vmatprep.subr.bf16.mxu0 0
    %91 = vmatpush1.bf16.msra.mxu0 %v82
    %92 = vmatprep.subr.bf16.mxu0 0
    %93 = vmatpush1.bf16.msra.mxu0 %v83
    %94 = vmatprep.subr.bf16.mxu0 0
    %95 = vmatpush1.bf16.msra.mxu0 0
    %96 = vmatprep.subr.bf16.mxu0 0
    %97 = vmatpush1.bf16.msra.mxu0 0
    %98 = vmatprep.subr.bf16.mxu0 0
    %99 = vmatpush1.bf16.msra.mxu0 0
    %100 = vmatprep.subr.bf16.mxu0 0
    %101 = vmatpush1.bf16.msra.mxu0 0
    %102 = vmatprep.subr.bf16.mxu0 0
    %103 = vmatpush1.bf16.msra.mxu0 0
    %104 = vmatprep.subr.bf16.mxu0 0
    %105 = vmatpush1.bf16.msra.mxu0 0
    %106 = vmatprep.subr.bf16.mxu0 0
    %107 = vmatpush1.bf16.msra.mxu0 0
    %108 = vmatprep.subr.bf16.mxu0 0
    %109 = vmatpush1.bf16.msra.mxu0 0
    %110 = vmatprep.subr.bf16.mxu0 0
    %111 = vmatpush1.bf16.msra.mxu0 0
    %112 = vmatprep.subr.bf16.mxu0 0
    %113 = vmatpush1.bf16.msra.mxu0 0
    %114 = vmatprep.subr.bf16.mxu0 0
    %115 = vmatpush1.bf16.msra.mxu0 0
    %116 = vmatprep.subr.bf16.mxu0 0
    %117 = vmatpush1.bf16.msra.mxu0 0
    %118 = vmatprep.subr.bf16.mxu0 0
    %119 = vmatpush1.bf16.msra.mxu0 0
    %120 = vmatprep.subr.bf16.mxu0 0
    %121 = vmatpush1.bf16.msra.mxu0 0
    %122 = vmatprep.mubr.bf16.mxu0 0
    %123 = vmatmul.mubr.bf16.gmra.mrb[0].mxu0 %v88
    %v124 = vpop.f32.mrb[0].mxu0
    %v125 = vadd.f32 %v72, %v124
    %v126 = vpop.f32.mrb[0].mxu0
    %v127 = vpop.f32.mrb[0].mxu0
    %v128 = vpop.f32.mrb[0].mxu0
    %129 = vdwg.mxu0
    %v130 = vmax.f32 %v125, 0.0
    %v131 = vpack.c.bf16 %v130, %v130
    %v132 = vld [vmem:[#allocation7] sm:$0xf]
    %v133 = vld [vmem:[#allocation7 + $0x4] sm:$0xf]
    %v134 = vld [vmem:[#allocation7 + $0x8] sm:$0xf]
    %v135 = vld [vmem:[#allocation7 + $0xc] sm:$0xf]
    %v136 = vld [vmem:[%s4] sm:$0x1]
    %v138 = vlaneseq
    %v139 = vshrl.u32 %v138, 7
    %v140 = vsub.s32 0, %v139
    %v141 = vrot.slane %v136, %v140
    %v147 = vunpack.c.l.b16 %v132
    %v148 = vunpack.c.l.b16 %v133
    %v149 = vunpack.c.l.b16 %v134
    %v150 = vunpack.c.l.b16 %v135
    %v151 = vpack.c.b16 %v148, %v147
    %v152 = vpack.c.b16 %v150, %v149
    %v156 = vsel %vm86, %v131, 0
    %158 = vmatprep.subr.bf16.mxu0 0
    %159 = vmatpush1.bf16.msra.mxu0 %v151
    %160 = vmatprep.subr.bf16.mxu0 0
    %161 = vmatpush1.bf16.msra.mxu0 %v152
    %162 = vmatprep.subr.bf16.mxu0 0
    %163 = vmatpush1.bf16.msra.mxu0 0
    %164 = vmatprep.subr.bf16.mxu0 0
    %165 = vmatpush1.bf16.msra.mxu0 0
    %166 = vmatprep.subr.bf16.mxu0 0
    %167 = vmatpush1.bf16.msra.mxu0 0
    %168 = vmatprep.subr.bf16.mxu0 0
    %169 = vmatpush1.bf16.msra.mxu0 0
    %170 = vmatprep.subr.bf16.mxu0 0
    %171 = vmatpush1.bf16.msra.mxu0 0
    %172 = vmatprep.subr.bf16.mxu0 0
    %173 = vmatpush1.bf16.msra.mxu0 0
    %174 = vmatprep.subr.bf16.mxu0 0
    %175 = vmatpush1.bf16.msra.mxu0 0
    %176 = vmatprep.subr.bf16.mxu0 0
    %177 = vmatpush1.bf16.msra.mxu0 0
    %178 = vmatprep.subr.bf16.mxu0 0
    %179 = vmatpush1.bf16.msra.mxu0 0
    %180 = vmatprep.subr.bf16.mxu0 0
    %181 = vmatpush1.bf16.msra.mxu0 0
    %182 = vmatprep.subr.bf16.mxu0 0
    %183 = vmatpush1.bf16.msra.mxu0 0
    %184 = vmatprep.subr.bf16.mxu0 0
    %185 = vmatpush1.bf16.msra.mxu0 0
    %186 = vmatprep.subr.bf16.mxu0 0
    %187 = vmatpush1.bf16.msra.mxu0 0
    %188 = vmatprep.subr.bf16.mxu0 0
    %189 = vmatpush1.bf16.msra.mxu0 0
    %190 = vmatprep.mubr.bf16.mxu0 0
    %191 = vmatmul.mubr.bf16.gmra.mrb[0].mxu0 %v156
    %v192 = vpop.f32.mrb[0].mxu0
    %v193 = vadd.f32 %v141, %v192
    %v194 = vpop.f32.mrb[0].mxu0
    %v195 = vpop.f32.mrb[0].mxu0
    %v196 = vpop.f32.mrb[0].mxu0
    %197 = vdwg.mxu0
    %v198 = vadd.f32 %v193, %v61
    %199 = vst.msk [vmem:[#allocation8] sm:$0xff] %vm86, %v198
    // Predicated region
    $region34: #{tpu_custom_call.1} parent=1 // pred_check
      _
    $region35: #{tpu_custom_call.1} parent=1 // pred_check_branch
      %201 = sbr.rel (0) target = $region37
    $region36: #{tpu_custom_call.1} parent=1 // pred_region
      %s203 = ssub.s32 128, 128
      %204 = vsyncadd [#allocation4], %s203
      %s206 = sshll.u32 [#allocation8], 4
      %s207 = int_to_ptr.vmem [resolvable:$true] %s206
      %209 = dma.vmem_to_hbm [thread:$0]  %s207, 128, %s5, [#allocation4]
    $region37: #{tpu_custom_call.1} parent=1 // pred_fallthru
      _
    // Predicated region
    $region38: #{tpu_custom_call.1} parent=1 // pred_check
      _
    $region39: #{tpu_custom_call.1} parent=1 // pred_check_branch
      %211 = sbr.rel (0) target = $region41
    $region40: #{tpu_custom_call.1} parent=1 // pred_region
      %212 = dma.done [#allocation4], 128
    $region41: #{tpu_custom_call.1} parent=1 // pred_fallthru
      _
    %213 = vsyncpa [#allocation3], 1
    %214 = vsyncpa [#allocation6], 1
    %215 = vsyncpa [#allocation4], 1

// kernel: tpu_custom_call.1
$region0: #{tpu_custom_call.1}
  #allocation0 [shape = 'u32[]', space=smem, size = 0x4, offset = 0x4, fixed_abs, tag = 'smem constant byte address 0x4 - core index']
  #allocation1 [shape = 'u32[144,128]{1,0:T(1,128)}', space=vmem, size = 0x12000, scoped, tag = 'internal scratch']
  %s0 = inlined_call_operand.hbm [shape: f32[8,32], index: 0, kind: input, shape index: {}]
  %s1 = inlined_call_operand.hbm [shape: bf16[32,32], index: 1, kind: input, shape index: {}]
  %s2 = inlined_call_operand.vmem [shape: f32[1,32], index: 2, kind: input, shape index: {}]
  %s3 = inlined_call_operand.hbm [shape: bf16[32,32], index: 3, kind: input, shape index: {}]
  %s4 = inlined_call_operand.vmem [shape: f32[1,32], index: 4, kind: input, shape index: {}]
  %s5 = inlined_call_operand.hbm [shape: f32[8,32], index: 5, kind: output, shape index: {}]
  %s6 = sld [smem:[#allocation0]]
  $region42: #{tpu_custom_call.1} parent=0
    _
  %s8 = ssub.s32 1, %s6
  %s9 = scalar_select 0, %s8, %s6
  $region1: #{tpu_custom_call.1} parent=0
    #allocation2 [shape = 'u8[4096]{0}', space=vmem, size = 0x1000, scoped, tag = 'input window, operand 0, single buffered']
    #allocation3 [shape = 's32[1]{0}', space=sflag, size = 0x4, scoped, tag = 'scoped memory for tpu_custom_call.1']
    #allocation4 [shape = 's32[1]{0}', space=sflag, size = 0x4, scoped, tag = 'scoped memory for tpu_custom_call.1']
    #allocation5 [shape = 'u8[8192]{0}', space=vmem, size = 0x2000, scoped, tag = 'input window, operand 1, single buffered']
    #allocation6 [shape = 's32[1]{0}', space=sflag, size = 0x4, scoped, tag = 'scoped memory for tpu_custom_call.1']
    #allocation7 [shape = 'u8[8192]{0}', space=vmem, size = 0x2000, scoped, tag = 'input window, operand 3, single buffered']
    #allocation8 [shape = 'u8[4096]{0}', space=vmem, size = 0x1000, scoped, tag = 'output window, operand 0, single buffered']
    %10 = vsyncpa [#allocation3], 0
    %11 = vsyncpa [#allocation6], 0
    %12 = vsyncpa [#allocation4], 0
    // Predicated region
    $region2: #{tpu_custom_call.1} parent=1 // pred_check
      _
    $region3: #{tpu_custom_call.1} parent=1 // pred_check_branch
      %14 = sbr.rel (0) target = $region5
    $region4: #{tpu_custom_call.1} parent=1 // pred_region
      %s16 = ssub.s32 128, 128
      %17 = vsyncadd [#allocation3], %s16
      %s19 = sshll.u32 [#allocation2], 4
      %s20 = int_to_ptr.vmem [resolvable:$true] %s19
      %22 = dma.hbm_to_vmem [thread:$0]  %s0, 128, %s20, [#allocation3]
    $region5: #{tpu_custom_call.1} parent=1 // pred_fallthru
      _
    // Predicated region
    $region6: #{tpu_custom_call.1} parent=1 // pred_check
      _
    $region7: #{tpu_custom_call.1} parent=1 // pred_check_branch
      %24 = sbr.rel (0) target = $region9
    $region8: #{tpu_custom_call.1} parent=1 // pred_region
      %s26 = ssub.s32 256, 256
      %27 = vsyncadd [#allocation6], %s26
      %s28 = sshll.u32 [#allocation5], 4
      %s29 = int_to_ptr.vmem [resolvable:$true] %s28
      %34 = dma.hbm_to_vmem [thread:$0]  %s1, 256, %s29, [#allocation6], 64, 64, 4
    $region9: #{tpu_custom_call.1} parent=1 // pred_fallthru
      _
    // Predicated region
    $region10: #{tpu_custom_call.1} parent=1 // pred_check
      _
    $region11: #{tpu_custom_call.1} parent=1 // pred_check_branch
      %36 = sbr.rel (0) target = $region13
    $region12: #{tpu_custom_call.1} parent=1 // pred_region
      _
    $region13: #{tpu_custom_call.1} parent=1 // pred_fallthru
      _
    // Predicated region
    $region14: #{tpu_custom_call.1} parent=1 // pred_check
      _
    $region15: #{tpu_custom_call.1} parent=1 // pred_check_branch
      %38 = sbr.rel (0) target = $region17
    $region16: #{tpu_custom_call.1} parent=1 // pred_region
      %s40 = ssub.s32 256, 256
      %41 = vsyncadd [#allocation6], %s40
      %s42 = sshll.u32 [#allocation7], 4
      %s43 = int_to_ptr.vmem [resolvable:$true] %s42
      %48 = dma.hbm_to_vmem [thread:$0]  %s3, 256, %s43, [#allocation6], 64, 64, 4
    $region17: #{tpu_custom_call.1} parent=1 // pred_fallthru
      _
    // Predicated region
    $region18: #{tpu_custom_call.1} parent=1 // pred_check
      _
    $region19: #{tpu_custom_call.1} parent=1 // pred_check_branch
      %50 = sbr.rel (0) target = $region21
    $region20: #{tpu_custom_call.1} parent=1 // pred_region
      _
    $region21: #{tpu_custom_call.1} parent=1 // pred_fallthru
      _
    // Predicated region
    $region22: #{tpu_custom_call.1} parent=1 // pred_check
      _
    $region23: #{tpu_custom_call.1} parent=1 // pred_check_branch
      %52 = sbr.rel (0) target = $region25
    $region24: #{tpu_custom_call.1} parent=1 // pred_region
      %53 = dma.done [#allocation3], 128
    $region25: #{tpu_custom_call.1} parent=1 // pred_fallthru
      _
    // Predicated region
    $region26: #{tpu_custom_call.1} parent=1 // pred_check
      _
    $region27: #{tpu_custom_call.1} parent=1 // pred_check_branch
      %55 = sbr.rel (0) target = $region29
    $region28: #{tpu_custom_call.1} parent=1 // pred_region
      %56 = dma.done [#allocation6], 256
    $region29: #{tpu_custom_call.1} parent=1 // pred_fallthru
      _
    // Predicated region
    $region30: #{tpu_custom_call.1} parent=1 // pred_check
      _
    $region31: #{tpu_custom_call.1} parent=1 // pred_check_branch
      %58 = sbr.rel (0) target = $region33
    $region32: #{tpu_custom_call.1} parent=1 // pred_region
      %59 = dma.done [#allocation6], 256
    $region33: #{tpu_custom_call.1} parent=1 // pred_fallthru
      _
    %v61 = vld [vmem:[#allocation2] sm:$0xff]
    %v62 = vpack.c.bf16 %v61, %v61
    %v63 = vld [vmem:[#allocation5] sm:$0xf]
    %v64 = vld [vmem:[#allocation5 + $0x4] sm:$0xf]
    %v65 = vld [vmem:[#allocation5 + $0x8] sm:$0xf]
    %v66 = vld [vmem:[#allocation5 + $0xc] sm:$0xf]
    %v67 = vld [vmem:[%s2] sm:$0x1]
    %v69 = vlaneseq
    %v70 = vshrl.u32 %v69, 7
    %v71 = vsub.s32 0, %v70
    %v72 = vrot.slane %v67, %v71
    %v78 = vunpack.c.l.b16 %v63
    %v79 = vunpack.c.l.b16 %v64
    %v80 = vunpack.c.l.b16 %v65
    %v81 = vunpack.c.l.b16 %v66
    %v82 = vpack.c.b16 %v79, %v78
    %v83 = vpack.c.b16 %v81, %v80
    %vm86 = vcmask 261120
    %v88 = vsel %vm86, %v62, 0
    %90 = vmatprep.subr.bf16.mxu0 0
    %91 = vmatpush1.bf16.msra.mxu0 %v82
    %92 = vmatprep.subr.bf16.mxu0 0
    %93 = vmatpush1.bf16.msra.mxu0 %v83
    %94 = vmatprep.subr.bf16.mxu0 0
    %95 = vmatpush1.bf16.msra.mxu0 0
    %96 = vmatprep.subr.bf16.mxu0 0
    %97 = vmatpush1.bf16.msra.mxu0 0
    %98 = vmatprep.subr.bf16.mxu0 0
    %99 = vmatpush1.bf16.msra.mxu0 0
    %100 = vmatprep.subr.bf16.mxu0 0
    %101 = vmatpush1.bf16.msra.mxu0 0
    %102 = vmatprep.subr.bf16.mxu0 0
    %103 = vmatpush1.bf16.msra.mxu0 0
    %104 = vmatprep.subr.bf16.mxu0 0
    %105 = vmatpush1.bf16.msra.mxu0 0
    %106 = vmatprep.subr.bf16.mxu0 0
    %107 = vmatpush1.bf16.msra.mxu0 0
    %108 = vmatprep.subr.bf16.mxu0 0
    %109 = vmatpush1.bf16.msra.mxu0 0
    %110 = vmatprep.subr.bf16.mxu0 0
    %111 = vmatpush1.bf16.msra.mxu0 0
    %112 = vmatprep.subr.bf16.mxu0 0
    %113 = vmatpush1.bf16.msra.mxu0 0
    %114 = vmatprep.subr.bf16.mxu0 0
    %115 = vmatpush1.bf16.msra.mxu0 0
    %116 = vmatprep.subr.bf16.mxu0 0
    %117 = vmatpush1.bf16.msra.mxu0 0
    %118 = vmatprep.subr.bf16.mxu0 0
    %119 = vmatpush1.bf16.msra.mxu0 0
    %120 = vmatprep.subr.bf16.mxu0 0
    %121 = vmatpush1.bf16.msra.mxu0 0
    %122 = vmatprep.mubr.bf16.mxu0 0
    %123 = vmatmul.mubr.bf16.gmra.mrb[0].mxu0 %v88
    %v124 = vpop.f32.mrb[0].mxu0
    %v125 = vadd.f32 %v72, %v124
    %v126 = vpop.f32.mrb[0].mxu0
    %v127 = vpop.f32.mrb[0].mxu0
    %v128 = vpop.f32.mrb[0].mxu0
    %129 = vdwg.mxu0
    %v130 = vmax.f32 %v125, 0.0
    %v131 = vpack.c.bf16 %v130, %v130
    %v132 = vld [vmem:[#allocation7] sm:$0xf]
    %v133 = vld [vmem:[#allocation7 + $0x4] sm:$0xf]
    %v134 = vld [vmem:[#allocation7 + $0x8] sm:$0xf]
    %v135 = vld [vmem:[#allocation7 + $0xc] sm:$0xf]
    %v136 = vld [vmem:[%s4] sm:$0x1]
    %v138 = vlaneseq
    %v139 = vshrl.u32 %v138, 7
    %v140 = vsub.s32 0, %v139
    %v141 = vrot.slane %v136, %v140
    %v147 = vunpack.c.l.b16 %v132
    %v148 = vunpack.c.l.b16 %v133
    %v149 = vunpack.c.l.b16 %v134
    %v150 = vunpack.c.l.b16 %v135
    %v151 = vpack.c.b16 %v148, %v147
    %v152 = vpack.c.b16 %v150, %v149
    %v156 = vsel %vm86, %v131, 0
    %158 = vmatprep.subr.bf16.mxu0 0
    %159 = vmatpush1.bf16.msra.mxu0 %v151
    %160 = vmatprep.subr.bf16.mxu0 0
    %161 = vmatpush1.bf16.msra.mxu0 %v152
    %162 = vmatprep.subr.bf16.mxu0 0
    %163 = vmatpush1.bf16.msra.mxu0 0
    %164 = vmatprep.subr.bf16.mxu0 0
    %165 = vmatpush1.bf16.msra.mxu0 0
    %166 = vmatprep.subr.bf16.mxu0 0
    %167 = vmatpush1.bf16.msra.mxu0 0
    %168 = vmatprep.subr.bf16.mxu0 0
    %169 = vmatpush1.bf16.msra.mxu0 0
    %170 = vmatprep.subr.bf16.mxu0 0
    %171 = vmatpush1.bf16.msra.mxu0 0
    %172 = vmatprep.subr.bf16.mxu0 0
    %173 = vmatpush1.bf16.msra.mxu0 0
    %174 = vmatprep.subr.bf16.mxu0 0
    %175 = vmatpush1.bf16.msra.mxu0 0
    %176 = vmatprep.subr.bf16.mxu0 0
    %177 = vmatpush1.bf16.msra.mxu0 0
    %178 = vmatprep.subr.bf16.mxu0 0
    %179 = vmatpush1.bf16.msra.mxu0 0
    %180 = vmatprep.subr.bf16.mxu0 0
    %181 = vmatpush1.bf16.msra.mxu0 0
    %182 = vmatprep.subr.bf16.mxu0 0
    %183 = vmatpush1.bf16.msra.mxu0 0
    %184 = vmatprep.subr.bf16.mxu0 0
    %185 = vmatpush1.bf16.msra.mxu0 0
    %186 = vmatprep.subr.bf16.mxu0 0
    %187 = vmatpush1.bf16.msra.mxu0 0
    %188 = vmatprep.subr.bf16.mxu0 0
    %189 = vmatpush1.bf16.msra.mxu0 0
    %190 = vmatprep.mubr.bf16.mxu0 0
    %191 = vmatmul.mubr.bf16.gmra.mrb[0].mxu0 %v156
    %v192 = vpop.f32.mrb[0].mxu0
    %v193 = vadd.f32 %v141, %v192
    %v194 = vpop.f32.mrb[0].mxu0
    %v195 = vpop.f32.mrb[0].mxu0
    %v196 = vpop.f32.mrb[0].mxu0
    %197 = vdwg.mxu0
    %v198 = vadd.f32 %v193, %v61
    %199 = vst.msk [vmem:[#allocation8] sm:$0xff] %vm86, %v198
    // Predicated region
    $region34: #{tpu_custom_call.1} parent=1 // pred_check
      _
    $region35: #{tpu_custom_call.1} parent=1 // pred_check_branch
      %201 = sbr.rel (0) target = $region37
    $region36: #{tpu_custom_call.1} parent=1 // pred_region
      %s203 = ssub.s32 128, 128
      %204 = vsyncadd [#allocation4], %s203
      %s206 = sshll.u32 [#allocation8], 4
      %s207 = int_to_ptr.vmem [resolvable:$true] %s206
      %209 = dma.vmem_to_hbm [thread:$0]  %s207, 128, %s5, [#allocation4]
    $region37: #{tpu_custom_call.1} parent=1 // pred_fallthru
      _
    // Predicated region
    $region38: #{tpu_custom_call.1} parent=1 // pred_check
      _
    $region39: #{tpu_custom_call.1} parent=1 // pred_check_branch
      %211 = sbr.rel (0) target = $region41
    $region40: #{tpu_custom_call.1} parent=1 // pred_region
      %212 = dma.done [#allocation4], 128
    $region41: #{tpu_custom_call.1} parent=1 // pred_fallthru
      _
    %213 = vsyncpa [#allocation3], 1
    %214 = vsyncpa [#allocation6], 1
    %215 = vsyncpa [#allocation4], 1

</llo_original>
